<compile_context>
chip_gen: v6e
topology: v6e:2x2x1
jax: 0.10.0
libtpu: 0.0.40
codegen_flags: <defaults>
</compile_context>

<pallas_src>
import functools

import jax
import jax.numpy as jnp
from jax.experimental import pallas as pl
from jax.experimental.pallas import tpu as pltpu

_LANE = 128   # native lane count


def _round_up(n, m):
    return ((n + m - 1) // m) * m


# ----------------------------------------------------------------------------
# Pallas kernels
# ----------------------------------------------------------------------------
def _mixup_batch_kernel(lam_ref, x_ref, o_ref):
    """o = lam * x + (1 - lam) * roll(x, 1, axis=0) for one [B, TF] feature chunk.

    B (the batch) is the full, untiled sublane extent of the block, so the roll
    is pure VMEM addressing: rows 1..B-1 read the row directly above them and
    row 0 wraps to row B-1.  Blocks are loaded/stored in the input dtype and the
    FMA happens in f32 in-register.
    """
    lam = lam_ref[0]                       # (1,) f32 scalar in SMEM
    one_minus = 1.0 - lam
    nb = x_ref.shape[0]
    if nb == 1:                            # roll(x, 1, 0) == x: mixing is identity
        o_ref[...] = x_ref[...]
        return
    # Rows 1..B-1: the "previous" batch row is the row just above in the block.
    o_ref[1:nb, :] = (lam * x_ref[1:nb, :].astype(jnp.float32)
                      + one_minus * x_ref[0:nb - 1, :].astype(jnp.float32)
                      ).astype(o_ref.dtype)
    # Row 0 wraps around to the last batch row.
    o_ref[0:1, :] = (lam * x_ref[0:1, :].astype(jnp.float32)
                     + one_minus * x_ref[nb - 1:nb, :].astype(jnp.float32)
                     ).astype(o_ref.dtype)


def _mixup_target_kernel(lam_ref, tgt_ref, tgt_prev_ref, o_ref):
    """Fused one-hot + mix without materializing one-hot temporaries.

    o[b, c] = lam * (c == tgt[b]) + (1 - lam) * (c == tgt_prev[b]), computed as
    two jnp.where selects straight off a class iota.  Padded class lanes never
    match a valid label, so they stay zero (sliced off outside).
    """
    lam = lam_ref[0]                       # (1,) f32 scalar in SMEM
    nb, nc = o_ref.shape
    classes = jax.lax.broadcasted_iota(jnp.int32, (nb, nc), 1)
    out = jnp.where(classes == tgt_ref[...], lam, 0.0)
    out = out + jnp.where(classes == tgt_prev_ref[...], 1.0 - lam, 0.0)
    o_ref[...] = out.astype(o_ref.dtype)


# ----------------------------------------------------------------------------
# Tiling helpers
# ----------------------------------------------------------------------------
def _vmem_capacity_bytes():
    """Physical VMEM of the local TPU generation (fallback: v7x minimum, 64 MiB)."""
    try:
        return int(pltpu.get_tpu_info().vmem_capacity_bytes)
    except Exception:
        return 64 << 20


def _pick_feature_tile(batch_rows, feat):
    """Feature-tile width (multiple of 128) for the batch-mix kernel.

    Budget one (B, tf) block at ~1/16 of physical VMEM in f32-equivalent bytes
    (~8 MiB on v5e/v6e, ~4 MiB on v7x) so in+out double-buffered blocks plus the
    in-register f32 temporaries fit comfortably.  Keep >= ~8 grid steps when
    there is enough feature work so DMA prefetch pipelines behind compute (and
    both v7x TensorCores get several steps each); tiny inputs run as one block.
    """
    vmem_cap = _vmem_capacity_bytes()
    block_budget = vmem_cap // 16
    tf = max(_LANE, block_budget // (batch_rows * 4) // _LANE * _LANE)
    f_tiles = pl.cdiv(feat, _LANE)
    if f_tiles >= 16:
        tf = min(tf, max(_LANE, pl.cdiv(f_tiles, 8) * _LANE))
    if tf >= feat:
        return feat, 1, vmem_cap           # single full-extent block (always legal)
    return tf, pl.cdiv(feat, tf), vmem_cap


# ----------------------------------------------------------------------------
# pallas_call wrappers
# ----------------------------------------------------------------------------
def _mix_batch(x2d, lam_arr):
    """x2d: [B, F] (input dtype preserved), lam_arr: (1,) f32  ->  [B, F] mixed."""
    B, F = x2d.shape
    tf, grid_f, vmem_cap = _pick_feature_tile(B, F)
    vmem_limit = min(vmem_cap * 3 // 4, 100 << 20)

    # TODO(synk): for extreme batch sizes (B ≳ ~10k on v7x) the whole-batch block no
    # longer fits VMEM even at the minimum 128-lane tile; add a batch-tiled variant
    # that feeds each batch block its boundary row (batch[i*TB-1]) as a tiny side
    # input so the roll still stays in VMEM.

    return pl.pallas_call(
        _mixup_batch_kernel,
        out_shape=jax.ShapeDtypeStruct((B, F), x2d.dtype),
        grid=(grid_f,),
        in_specs=[
            pl.BlockSpec(memory_space=pltpu.MemorySpace.SMEM),      # lam scalar
            pl.BlockSpec((B, tf), lambda j: (0, j)),                # batch chunk
        ],
        out_specs=pl.BlockSpec((B, tf), lambda j: (0, j)),
        compiler_params=pltpu.CompilerParams(
            dimension_semantics=("parallel",),
            vmem_limit_bytes=int(vmem_limit),
        ),
    )(lam_arr, x2d)


def _mix_target(target, lam_arr, num_classes, out_dtype):
    """target: [B] int -> [B, num_classes] mixed one-hot in `out_dtype`."""
    B = target.shape[0]
    nc_pad = _round_up(num_classes, _LANE)          # lane-dense output, sliced below
    tgt = target.astype(jnp.int32).reshape(B, 1)
    tgt_prev = jnp.roll(tgt, 1, axis=0)             # tiny (B,1) roll in plain JAX
    tb = B if B <= 1024 else 1024                   # grid over batch for large B

    out = pl.pallas_call(
        _mixup_target_kernel,
        out_shape=jax.ShapeDtypeStruct((B, nc_pad), out_dtype),
        grid=(pl.cdiv(B, tb),),
        in_specs=[
            pl.BlockSpec(memory_space=pltpu.MemorySpace.SMEM),      # lam scalar
            pl.BlockSpec((tb, 1), lambda i: (i, 0)),                # tgt
            pl.BlockSpec((tb, 1), lambda i: (i, 0)),                # tgt_prev
        ],
        out_specs=pl.BlockSpec((tb, nc_pad), lambda i: (i, 0)),
        compiler_params=pltpu.CompilerParams(dimension_semantics=("parallel",)),
    )(lam_arr, tgt, tgt_prev)
    return out[:, :num_classes] if nc_pad != num_classes else out


def mixup_apply(batch, target, lam, *, num_classes):
    """Apply mixup with a given lambda (lam = 1.0 => identity batch + plain one-hot)."""
    B, C, H, W = batch.shape
    lam_arr = jnp.asarray(lam, dtype=jnp.float32).reshape(1)
    x2d = batch.reshape(B, C * H * W)               # zero-copy flatten, keeps dtype
    batch_out = _mix_batch(x2d, lam_arr).reshape(B, C, H, W)
    target_out = _mix_target(target, lam_arr, num_classes, batch.dtype)
    return batch_out, target_out


# ----------------------------------------------------------------------------
# Module-equivalent wrapper
# ----------------------------------------------------------------------------
class RandomMixup:
    """JAX/Pallas port of the PyTorch RandomMixup transform (functional RNG via key)."""

    def __init__(self, num_classes, p=0.5, alpha=1.0, inplace=False):
        if num_classes < 1:
            raise ValueError(
                f"Please provide a valid positive value for the num_classes. "
                f"Got num_classes={num_classes}")
        if alpha <= 0:
            raise ValueError("Alpha param can't be zero.")
        self.num_classes = num_classes
        self.p = float(p)
        self.alpha = float(alpha)
        self.inplace = inplace   # JAX arrays are immutable; kept only for API parity.

    def __call__(self, key, batch, target):
        if batch.ndim != 4:
            raise ValueError(f"Batch ndim should be 4. Got {batch.ndim}")
        if target.ndim != 1:
            raise ValueError(f"Target ndim should be 1. Got {target.ndim}")
        if not jnp.issubdtype(batch.dtype, jnp.floating):
            raise TypeError(f"Batch dtype should be a float tensor. Got {batch.dtype}.")
        if not jnp.issubdtype(target.dtype, jnp.integer):
            # torch requires int64; JAX TPU default ints are int32 — accept any int.
            raise TypeError(f"Target dtype should be an integer tensor. Got {target.dtype}.")

        k_apply, k_lam = jax.random.split(key)
        apply = jax.random.uniform(k_apply, ()) < self.p
        # torch._sample_dirichlet([alpha, alpha])[0]  ==  Beta(alpha, alpha)
        lam = jax.random.beta(k_lam, self.alpha, self.alpha)
        lam_eff = jnp.where(apply, lam, 1.0).astype(jnp.float32)
        return mixup_apply(batch, target, lam_eff, num_classes=self.num_classes)


# ----------------------------------------------------------------------------
# Demo / self-check
# ----------------------------------------------------------------------------
if __name__ == "__main__":
    key = jax.random.PRNGKey(0)
    k_x, k_t, k_rng = jax.random.split(key, 3)

    B, C, H, W = 4, 3, 16, 16
    NUM_CLASSES = 10
    batch = jax.random.normal(k_x, (B, C, H, W), jnp.float32)
    target = jax.random.randint(k_t, (B,), 0, NUM_CLASSES, jnp.int32)

    # 1) Deterministic-lambda path, checked against a pure-JAX reference.
    lam = jnp.float32(0.3)
    apply_fn = jax.jit(functools.partial(mixup_apply, num_classes=NUM_CLASSES))
    b_out, t_out = jax.block_until_ready(apply_fn(batch, target, lam))

    b_ref = lam * batch + (1.0 - lam) * jnp.roll(batch, 1, axis=0)
    onehot = jax.nn.one_hot(target, NUM_CLASSES, dtype=jnp.float32)
    t_ref = lam * onehot + (1.0 - lam) * jnp.roll(onehot, 1, axis=0)

    assert b_out.shape == (B, C, H, W) and b_out.dtype == batch.dtype
    assert t_out.shape == (B, NUM_CLASSES) and t_out.dtype == batch.dtype
    assert bool(jnp.allclose(b_out, b_ref, atol=1e-6, rtol=1e-6))
    assert bool(jnp.allclose(t_out, t_ref, atol=1e-6, rtol=1e-6))

    # 2) Full module path with random apply-probability and Beta-sampled lambda.
    mixer = RandomMixup(num_classes=NUM_CLASSES, p=0.5, alpha=1.0)
    fwd = jax.jit(mixer.__call__)
    b_rand, t_rand = jax.block_until_ready(fwd(k_rng, batch, target))

    assert b_rand.shape == batch.shape and t_rand.shape == (B, NUM_CLASSES)
    assert bool(jnp.all(jnp.isfinite(b_rand)))
    assert bool(jnp.all(jnp.isfinite(t_rand)))
    # Mixed one-hot rows always sum to 1 (lam + (1 - lam)).
    assert bool(jnp.allclose(t_rand.sum(axis=1), 1.0, atol=1e-6))

    print("KERNEL_OK")
</pallas_src>

<mosaic_0001>
module attributes {stable_mosaic.version = 11 : i64} {
  func.func @_mixup_batch_kernel(%arg0: i32, %arg1: memref<1xf32, #tpu.memory_space<smem>>, %arg2: memref<4x768xf32, #tpu.memory_space<vmem>>, %arg3: memref<4x768xf32, #tpu.memory_space<vmem>>) attributes {dimension_semantics = [#tpu.dimension_semantics<parallel>], iteration_bounds = array<i64: 1>, scalar_prefetch = 0 : i64, scratch_operands = 0 : i64, tpu.core_type = #tpu.core_type<tc>, window_params = [{transform_indices = @transform_0, window_bounds = array<i64: 1>}, {transform_indices = @transform_1, window_bounds = array<i64: 4, 768>}, {transform_indices = @transform_2, window_bounds = array<i64: 4, 768>}]} {
    %c0 = arith.constant 0 : index
    %0 = memref.load %arg1[%c0] : memref<1xf32, #tpu.memory_space<smem>>
    %cst = arith.constant 1.000000e+00 : f32
    %1 = arith.subf %cst, %0 : f32
    %c1 = arith.constant 1 : index
    %c0_0 = arith.constant 0 : index
    %2 = vector.load %arg2[%c1, %c0_0] : memref<4x768xf32, #tpu.memory_space<vmem>>, vector<3x768xf32>
    %3 = vector.broadcast %0 : f32 to vector<3x768xf32>
    %4 = arith.mulf %3, %2 : vector<3x768xf32>
    %c0_1 = arith.constant 0 : index
    %c0_2 = arith.constant 0 : index
    %5 = vector.load %arg2[%c0_1, %c0_2] : memref<4x768xf32, #tpu.memory_space<vmem>>, vector<3x768xf32>
    %6 = vector.broadcast %1 : f32 to vector<3x768xf32>
    %7 = arith.mulf %6, %5 : vector<3x768xf32>
    %8 = arith.addf %4, %7 : vector<3x768xf32>
    %c1_3 = arith.constant 1 : index
    %c0_4 = arith.constant 0 : index
    %9 = vector.load %arg3[%c1_3, %c0_4] : memref<4x768xf32, #tpu.memory_space<vmem>>, vector<3x768xf32>
    tpu.vector_store %arg3[%c1_3, %c0_4], %8 {strides = array<i32>} : memref<4x768xf32, #tpu.memory_space<vmem>>, vector<3x768xf32>,
    %c0_5 = arith.constant 0 : index
    %c0_6 = arith.constant 0 : index
    %10 = vector.load %arg2[%c0_5, %c0_6] : memref<4x768xf32, #tpu.memory_space<vmem>>, vector<1x768xf32>
    %11 = vector.broadcast %0 : f32 to vector<1x768xf32>
    %12 = arith.mulf %11, %10 : vector<1x768xf32>
    %c3 = arith.constant 3 : index
    %c0_7 = arith.constant 0 : index
    %13 = vector.load %arg2[%c3, %c0_7] : memref<4x768xf32, #tpu.memory_space<vmem>>, vector<1x768xf32>
    %14 = vector.broadcast %1 : f32 to vector<1x768xf32>
    %15 = arith.mulf %14, %13 : vector<1x768xf32>
    %16 = arith.addf %12, %15 : vector<1x768xf32>
    %c0_8 = arith.constant 0 : index
    %c0_9 = arith.constant 0 : index
    %17 = vector.load %arg3[%c0_8, %c0_9] : memref<4x768xf32, #tpu.memory_space<vmem>>, vector<1x768xf32>
    tpu.vector_store %arg3[%c0_8, %c0_9], %16 {strides = array<i32>} : memref<4x768xf32, #tpu.memory_space<vmem>>, vector<1x768xf32>,
    return
  }
  func.func @transform_0(%arg0: i32) -> i32 {
    %c0_i32 = arith.constant 0 : i32
    %c0_i32_0 = arith.constant 0 : i32
    return %c0_i32 : i32
  }
  func.func @transform_1(%arg0: i32) -> (i32, i32) {
    %c0_i32 = arith.constant 0 : i32
    %c0_i32_0 = arith.constant 0 : i32
    return %c0_i32, %arg0 : i32, i32
  }
  func.func @transform_2(%arg0: i32) -> (i32, i32) {
    %c0_i32 = arith.constant 0 : i32
    %c0_i32_0 = arith.constant 0 : i32
    return %c0_i32, %arg0 : i32, i32
  }
}

module attributes {stable_mosaic.version = 11 : i64} {
  func.func @_mixup_target_kernel(%arg0: i32, %arg1: memref<1xf32, #tpu.memory_space<smem>>, %arg2: memref<4x1xi32, #tpu.memory_space<vmem>>, %arg3: memref<4x1xi32, #tpu.memory_space<vmem>>, %arg4: memref<4x128xf32, #tpu.memory_space<vmem>>) attributes {dimension_semantics = [#tpu.dimension_semantics<parallel>], iteration_bounds = array<i64: 1>, scalar_prefetch = 0 : i64, scratch_operands = 0 : i64, tpu.core_type = #tpu.core_type<tc>, window_params = [{transform_indices = @transform_0, window_bounds = array<i64: 1>}, {transform_indices = @transform_1, window_bounds = array<i64: 4, 1>}, {transform_indices = @transform_2, window_bounds = array<i64: 4, 1>}, {transform_indices = @transform_3, window_bounds = array<i64: 4, 128>}]} {
    %c0 = arith.constant 0 : index
    %0 = memref.load %arg1[%c0] : memref<1xf32, #tpu.memory_space<smem>>
    %1 = tpu.iota {dimensions = array<i32: 1>} : vector<4x128xi32>
    %c0_0 = arith.constant 0 : index
    %c0_1 = arith.constant 0 : index
    %2 = vector.load %arg2[%c0_0, %c0_1] : memref<4x1xi32, #tpu.memory_space<vmem>>, vector<4x1xi32>
    %3 = vector.broadcast %2 : vector<4x1xi32> to vector<4x128xi32>
    %4 = arith.cmpi eq, %1, %3 : vector<4x128xi32>
    %cst = arith.constant 0.000000e+00 : f32
    %5 = vector.broadcast %0 : f32 to vector<4x128xf32>
    %6 = vector.broadcast %cst : f32 to vector<4x128xf32>
    %7 = arith.select %4, %5, %6 : vector<4x128xi1>, vector<4x128xf32>
    %c0_2 = arith.constant 0 : index
    %c0_3 = arith.constant 0 : index
    %8 = vector.load %arg3[%c0_2, %c0_3] : memref<4x1xi32, #tpu.memory_space<vmem>>, vector<4x1xi32>
    %9 = vector.broadcast %8 : vector<4x1xi32> to vector<4x128xi32>
    %10 = arith.cmpi eq, %1, %9 : vector<4x128xi32>
    %cst_4 = arith.constant 1.000000e+00 : f32
    %11 = arith.subf %cst_4, %0 : f32
    %cst_5 = arith.constant 0.000000e+00 : f32
    %12 = vector.broadcast %11 : f32 to vector<4x128xf32>
    %13 = vector.broadcast %cst_5 : f32 to vector<4x128xf32>
    %14 = arith.select %10, %12, %13 : vector<4x128xi1>, vector<4x128xf32>
    %15 = arith.addf %7, %14 : vector<4x128xf32>
    %c0_6 = arith.constant 0 : index
    %c0_7 = arith.constant 0 : index
    %16 = vector.load %arg4[%c0_6, %c0_7] : memref<4x128xf32, #tpu.memory_space<vmem>>, vector<4x128xf32>
    tpu.vector_store %arg4[%c0_6, %c0_7], %15 {strides = array<i32>} : memref<4x128xf32, #tpu.memory_space<vmem>>, vector<4x128xf32>,
    return
  }
  func.func @transform_0(%arg0: i32) -> i32 {
    %c0_i32 = arith.constant 0 : i32
    %c0_i32_0 = arith.constant 0 : i32
    return %c0_i32 : i32
  }
  func.func @transform_1(%arg0: i32) -> (i32, i32) {
    %c0_i32 = arith.constant 0 : i32
    %c0_i32_0 = arith.constant 0 : i32
    return %arg0, %c0_i32 : i32, i32
  }
  func.func @transform_2(%arg0: i32) -> (i32, i32) {
    %c0_i32 = arith.constant 0 : i32
    %c0_i32_0 = arith.constant 0 : i32
    return %arg0, %c0_i32 : i32, i32
  }
  func.func @transform_3(%arg0: i32) -> (i32, i32) {
    %c0_i32 = arith.constant 0 : i32
    %c0_i32_0 = arith.constant 0 : i32
    return %arg0, %c0_i32 : i32, i32
  }
}

</mosaic_0001>

<llo_original>
// kernel: mixup_apply.2
$region0: #{mixup_apply.2}
  #allocation0 [shape = 'u32[]', space=smem, size = 0x4, offset = 0x4, fixed_abs, tag = 'smem constant byte address 0x4 - core index']
  #allocation1 [shape = 'u32[144,128]{1,0:T(1,128)}', space=vmem, size = 0x12000, scoped, tag = 'internal scratch']
  #allocation2 [shape = 'f32[1]{0:T(128)S(6)}', space=smem, size = 0x200, scoped, tag = 'scoped memory for mixup_apply.2']
  %s0 = inlined_call_operand.<no memory space> [shape: f32[1], index: 0, kind: input, shape index: {}]
  %s1 = inlined_call_operand.vmem [shape: f32[4,768], index: 1, kind: input, shape index: {}]
  %s2 = inlined_call_operand.vmem [shape: f32[4,768], index: 2, kind: output, shape index: {}]
  %s3 = sld [smem:[#allocation0]]
  $region18: #{mixup_apply.2} parent=0
    _
  %s5 = ssub.s32 1, %s3
  %s6 = scalar_select 0, %s5, %s3
  %7 = sst [smem:[#allocation2]] %s0
  // Predicated region
  $region2: #{mixup_apply.2} parent=0 // pred_check
    _
  $region3: #{mixup_apply.2} parent=0 // pred_check_branch
    %9 = sbr.rel (0) target = $region5
  $region4: #{mixup_apply.2} parent=0 // pred_region
    _
  $region5: #{mixup_apply.2} parent=0 // pred_fallthru
    _
  // Predicated region
  $region6: #{mixup_apply.2} parent=0 // pred_check
    _
  $region7: #{mixup_apply.2} parent=0 // pred_check_branch
    %11 = sbr.rel (0) target = $region9
  $region8: #{mixup_apply.2} parent=0 // pred_region
    _
  $region9: #{mixup_apply.2} parent=0 // pred_fallthru
    _
  %s12 = sld [smem:[#allocation2]]
  %s13 = ssub.f32 1.0, %s12
  %v14 = vld [vmem:[%s1] sm:$0xee]
  %v15 = vld [vmem:[%s1 + $0x8] sm:$0xee]
  %v16 = vld [vmem:[%s1 + $0x10] sm:$0xee]
  %v17 = vstv %s12
  %v18 = vmul.f32 %v17, %v14
  %v19 = vmul.f32 %v17, %v15
  %v20 = vmul.f32 %v17, %v16
  %v21 = vld [vmem:[%s1] sm:$0x77]
  %v22 = vld [vmem:[%s1 + $0x8] sm:$0x77]
  %v23 = vld [vmem:[%s1 + $0x10] sm:$0x77]
  %v24 = vstv %s13
  %v25 = vmul.f32 %v24, %v21
  %v26 = vmul.f32 %v24, %v22
  %v27 = vmul.f32 %v24, %v23
  %v31 = vrot.slane %v25, 7
  %v32 = vrot.slane %v26, 7
  %v33 = vrot.slane %v27, 7
  %v37 = vadd.f32 %v18, %v31
  %v38 = vadd.f32 %v19, %v32
  %v39 = vadd.f32 %v20, %v33
  %40 = vst [vmem:[%s2] sm:$0xee] %v37
  %41 = vst [vmem:[%s2 + $0x8] sm:$0xee] %v38
  %42 = vst [vmem:[%s2 + $0x10] sm:$0xee] %v39
  %v43 = vld [vmem:[%s1] ss:$4 sm:$0x3f]
  %v44 = vmul.f32 %v17, %v43
  %s45 = scalar_lea.vmem %s1, 3
  %v46 = vld [vmem:[%s45] ss:$4 sm:$0x3f]
  %v47 = vmul.f32 %v24, %v46
  %v48 = vadd.f32 %v44, %v47
  %v49 = vlaneseq
  %vm50 = vcmp.ge.s32.totalorder %v49, 0
  %vm51 = vcmp.lt.s32.totalorder %v49, 768
  %vm52 = vmand %vm50, %vm51
  %53 = vst.msk [vmem:[%s2] ss:$4 sm:$0x3f] %vm52, %v48
  // Predicated region
  $region10: #{mixup_apply.2} parent=0 // pred_check
    _
  $region11: #{mixup_apply.2} parent=0 // pred_check_branch
    %55 = sbr.rel (0) target = $region13
  $region12: #{mixup_apply.2} parent=0 // pred_region
    _
  $region13: #{mixup_apply.2} parent=0 // pred_fallthru
    _
  // Predicated region
  $region14: #{mixup_apply.2} parent=0 // pred_check
    _
  $region15: #{mixup_apply.2} parent=0 // pred_check_branch
    %57 = sbr.rel (0) target = $region17
  $region16: #{mixup_apply.2} parent=0 // pred_region
    _
  $region17: #{mixup_apply.2} parent=0 // pred_fallthru
    _

// kernel: mixup_apply.3
$region0: #{mixup_apply.3}
  #allocation0 [shape = 'u32[]', space=smem, size = 0x4, offset = 0x4, fixed_abs, tag = 'smem constant byte address 0x4 - core index']
  #allocation1 [shape = 'u32[144,128]{1,0:T(1,128)}', space=vmem, size = 0x12000, scoped, tag = 'internal scratch']
  #allocation2 [shape = 'f32[1]{0:T(128)S(6)}', space=smem, size = 0x200, scoped, tag = 'scoped memory for mixup_apply.3']
  %s0 = inlined_call_operand.<no memory space> [shape: f32[1], index: 0, kind: input, shape index: {}]
  %s1 = inlined_call_operand.vmem [shape: s32[4,1], index: 1, kind: input, shape index: {}]
  %s2 = inlined_call_operand.vmem [shape: s32[4,1], index: 2, kind: input, shape index: {}]
  %s3 = inlined_call_operand.hbm [shape: f32[4,128], index: 3, kind: output, shape index: {}]
  %s4 = sld [smem:[#allocation0]]
  $region22: #{mixup_apply.3} parent=0
    _
  %s6 = ssub.s32 1, %s4
  %s7 = scalar_select 0, %s6, %s4
  %8 = sst [smem:[#allocation2]] %s0
  $region1: #{mixup_apply.3} parent=0
    #allocation3 [shape = 'u8[2048]{0}', space=vmem, size = 0x800, scoped, tag = 'output window, operand 0, single buffered']
    #allocation4 [shape = 's32[1]{0}', space=sflag, size = 0x4, scoped, tag = 'scoped memory for mixup_apply.3']
    %9 = vsyncpa [#allocation4], 0
    // Predicated region
    $region2: #{mixup_apply.3} parent=1 // pred_check
      _
    $region3: #{mixup_apply.3} parent=1 // pred_check_branch
      %11 = sbr.rel (0) target = $region5
    $region4: #{mixup_apply.3} parent=1 // pred_region
      _
    $region5: #{mixup_apply.3} parent=1 // pred_fallthru
      _
    // Predicated region
    $region6: #{mixup_apply.3} parent=1 // pred_check
      _
    $region7: #{mixup_apply.3} parent=1 // pred_check_branch
      %13 = sbr.rel (0) target = $region9
    $region8: #{mixup_apply.3} parent=1 // pred_region
      _
    $region9: #{mixup_apply.3} parent=1 // pred_fallthru
      _
    // Predicated region
    $region10: #{mixup_apply.3} parent=1 // pred_check
      _
    $region11: #{mixup_apply.3} parent=1 // pred_check_branch
      %15 = sbr.rel (0) target = $region13
    $region12: #{mixup_apply.3} parent=1 // pred_region
      _
    $region13: #{mixup_apply.3} parent=1 // pred_fallthru
      _
    %s16 = sld [smem:[#allocation2]]
    %v17 = vlaneseq
    %v18 = vand.u32 %v17, 127
    %v19 = vld [vmem:[%s1] sm:$0xf]
    %20 = vset.pattern.permute.xlu0 0
    %21 = vperm.xlu0 %20, %v19
    %v22 = vpop.permute.xlu0 %21
    %vm23 = vcmp.eq.s32.totalorder %v18, %v22
    %v24 = vstv %s16
    %v25 = vsel %vm23, %v24, 0.0
    %v26 = vld [vmem:[%s2] sm:$0xf]
    %27 = vset.pattern.permute.xlu0 0
    %28 = vperm.xlu0 %27, %v26
    %v29 = vpop.permute.xlu0 %28
    %vm30 = vcmp.eq.s32.totalorder %v18, %v29
    %s31 = ssub.f32 1.0, %s16
    %v32 = vstv %s31
    %v33 = vsel %vm30, %v32, 0.0
    %v34 = vadd.f32 %v25, %v33
    %35 = vst [vmem:[#allocation3] sm:$0xf] %v34
    // Predicated region
    $region14: #{mixup_apply.3} parent=1 // pred_check
      _
    $region15: #{mixup_apply.3} parent=1 // pred_check_branch
      %37 = sbr.rel (0) target = $region17
    $region16: #{mixup_apply.3} parent=1 // pred_region
      %s39 = ssub.s32 64, 64
      %40 = vsyncadd [#allocation4], %s39
      %s42 = sshll.u32 [#allocation3], 4
      %s43 = int_to_ptr.vmem [resolvable:$true] %s42
      %45 = dma.vmem_to_hbm [thread:$0]  %s43, 64, %s3, [#allocation4]
    $region17: #{mixup_apply.3} parent=1 // pred_fallthru
      _
    // Predicated region
    $region18: #{mixup_apply.3} parent=1 // pred_check
      _
    $region19: #{mixup_apply.3} parent=1 // pred_check_branch
      %47 = sbr.rel (0) target = $region21
    $region20: #{mixup_apply.3} parent=1 // pred_region
      %48 = dma.done [#allocation4], 64
    $region21: #{mixup_apply.3} parent=1 // pred_fallthru
      _
    %49 = vsyncpa [#allocation4], 1

</llo_original>
